<compile_context>
chip_gen: v7x
topology: tpu7x:2x2x1
jax: 0.10.0
libtpu: 0.0.40
codegen_flags: <defaults>
</compile_context>

<pallas_src>
import functools
import math

import jax
import jax.numpy as jnp
from jax import lax
from jax.experimental import pallas as pl
from jax.experimental.pallas import tpu as pltpu

EPS = 1e-5


# --------------------------------------------------------------------------------------
# helpers
# --------------------------------------------------------------------------------------
def _pick_tile(dim: int, pref: int, align: int) -> int:
    """Largest power-of-two tile <= pref (>= align) dividing dim, else the full extent."""
    if dim <= pref:
        return dim                      # full extent is always a legal block shape
    t = pref
    while t >= align:
        if dim % t == 0:
            return t
        t //= 2
    return dim                          # fall back to a single full-extent block


def _dim_semantics(*sems):
    """dimension_semantics compiler params (dropped on non-TPU backends / interpret)."""
    if jax.default_backend() != "tpu":
        return None
    cp_cls = getattr(pltpu, "CompilerParams", None) or getattr(pltpu, "TPUCompilerParams", None)
    if cp_cls is None:
        return None
    return cp_cls(dimension_semantics=tuple(sems))


# --------------------------------------------------------------------------------------
# Kernel 1: LayerNormalization  (alpha * (x - mean) / (std + eps) + bias, unbiased std)
# --------------------------------------------------------------------------------------
def _layernorm_kernel(x_ref, alpha_ref, bias_ref, o_ref):
    x = x_ref[...].astype(jnp.float32)
    f = x.shape[-1]
    mean = jnp.mean(x, axis=-1, keepdims=True)
    diff = x - mean
    # torch.Tensor.std() is the unbiased estimator (divide by N-1); eps is added to std.
    var = jnp.sum(diff * diff, axis=-1, keepdims=True) * (1.0 / (f - 1))
    inv = 1.0 / (jnp.sqrt(var) + EPS)
    y = alpha_ref[...].astype(jnp.float32) * diff * inv + bias_ref[...].astype(jnp.float32)
    o_ref[...] = y.astype(o_ref.dtype)


def layernorm(x2d, alpha, bias, *, row_tile=512):
    R, F = x2d.shape
    tr = _pick_tile(R, row_tile, 8)
    return pl.pallas_call(
        _layernorm_kernel,
        out_shape=jax.ShapeDtypeStruct((R, F), x2d.dtype),
        grid=(pl.cdiv(R, tr),),
        in_specs=[
            pl.BlockSpec((tr, F), lambda i: (i, 0)),
            pl.BlockSpec((1, F), lambda i: (0, 0)),      # alpha stays resident
            pl.BlockSpec((1, F), lambda i: (0, 0)),      # bias stays resident
        ],
        out_specs=pl.BlockSpec((tr, F), lambda i: (i, 0)),
        compiler_params=_dim_semantics("parallel"),
    )(x2d, alpha.reshape(1, F), bias.reshape(1, F))


# --------------------------------------------------------------------------------------
# Kernel 2: residual add + dropout   out = x + y * keep_mask   (mask already scaled 1/(1-p))
# --------------------------------------------------------------------------------------
def _residual_kernel(*refs, has_mask):
    if has_mask:
        x_ref, y_ref, m_ref, o_ref = refs
        y = y_ref[...].astype(jnp.float32) * m_ref[...]
    else:
        x_ref, y_ref, o_ref = refs
        y = y_ref[...].astype(jnp.float32)
    o_ref[...] = (x_ref[...].astype(jnp.float32) + y).astype(o_ref.dtype)


def residual_add(x2d, y2d, drop_mask=None, *, row_tile=512):
    R, F = x2d.shape
    tr = _pick_tile(R, row_tile, 8)
    has_mask = drop_mask is not None
    spec = pl.BlockSpec((tr, F), lambda i: (i, 0))
    in_specs = [spec, spec] + ([spec] if has_mask else [])
    operands = (x2d, y2d) + ((drop_mask,) if has_mask else ())
    # NOTE: input_output_aliases={0: 0} could reuse x's HBM buffer under jit; omitted to keep
    # eager / interpret execution simple.
    return pl.pallas_call(
        functools.partial(_residual_kernel, has_mask=has_mask),
        out_shape=jax.ShapeDtypeStruct((R, F), x2d.dtype),
        grid=(pl.cdiv(R, tr),),
        in_specs=in_specs,
        out_specs=spec,
        compiler_params=_dim_semantics("parallel"),
    )(*operands)


# --------------------------------------------------------------------------------------
# Kernel 3: tiled linear  y = act((x * in_mask) @ w + b)
# --------------------------------------------------------------------------------------
def _linear_kernel(*refs, activation, has_mask):
    if has_mask:
        x_ref, m_ref, w_ref, b_ref, o_ref, acc_ref = refs
    else:
        x_ref, w_ref, b_ref, o_ref, acc_ref = refs
        m_ref = None
    k = pl.program_id(2)

    @pl.when(k == 0)
    def _():
        acc_ref[...] = jnp.zeros_like(acc_ref)

    a = x_ref[...].astype(jnp.float32)
    if has_mask:
        a = a * m_ref[...].astype(jnp.float32)
    acc_ref[...] += jnp.dot(a, w_ref[...].astype(jnp.float32),
                            preferred_element_type=jnp.float32)

    @pl.when(k == pl.num_programs(2) - 1)
    def _():
        y = acc_ref[...] + b_ref[...].astype(jnp.float32)
        if activation == "relu":
            y = jnp.maximum(y, 0.0)
        o_ref[...] = y.astype(o_ref.dtype)


def linear(x2d, w, b, *, activation=None, in_mask=None,
           tm_pref=256, tn_pref=256, tk_pref=512):
    M, K = x2d.shape
    Kw, N = w.shape
    assert K == Kw
    tm = _pick_tile(M, tm_pref, 8)
    tn = _pick_tile(N, tn_pref, 128)
    tk = _pick_tile(K, tk_pref, 128)
    has_mask = in_mask is not None

    in_specs = [pl.BlockSpec((tm, tk), lambda i, j, k: (i, k))]
    operands = [x2d]
    if has_mask:
        in_specs.append(pl.BlockSpec((tm, tk), lambda i, j, k: (i, k)))
        operands.append(in_mask)
    in_specs += [
        pl.BlockSpec((tk, tn), lambda i, j, k: (k, j)),
        pl.BlockSpec((1, tn), lambda i, j, k: (0, j)),
    ]
    operands += [w, b.reshape(1, N)]

    return pl.pallas_call(
        functools.partial(_linear_kernel, activation=activation, has_mask=has_mask),
        out_shape=jax.ShapeDtypeStruct((M, N), x2d.dtype),
        grid=(pl.cdiv(M, tm), pl.cdiv(N, tn), pl.cdiv(K, tk)),
        in_specs=in_specs,
        out_specs=pl.BlockSpec((tm, tn), lambda i, j, k: (i, j)),
        scratch_shapes=[pltpu.VMEM((tm, tn), jnp.float32)],
        compiler_params=_dim_semantics("parallel", "parallel", "arbitrary"),
    )(*operands)


# --------------------------------------------------------------------------------------
# Kernel 4: scaled dot-product attention (one (batch, head) tile per grid step)
# --------------------------------------------------------------------------------------
def _attention_kernel(*refs, scale, has_dropout):
    if has_dropout:
        q_ref, k_ref, v_ref, m_ref, d_ref, o_ref = refs
    else:
        q_ref, k_ref, v_ref, m_ref, o_ref = refs
        d_ref = None
    q = q_ref[0, 0].astype(jnp.float32)          # (S, d_k)
    k = k_ref[0, 0].astype(jnp.float32)          # (S, d_k)
    v = v_ref[0, 0].astype(jnp.float32)          # (S, d_k)
    # scores = q @ k^T / sqrt(d_k)  (contract d_k axes directly, no explicit transpose)
    s = lax.dot_general(q, k, (((1,), (1,)), ((), ())),
                        preferred_element_type=jnp.float32) * scale
    s = jnp.where(m_ref[0] == 0.0, -1e9, s)
    s = s - jnp.max(s, axis=-1, keepdims=True)
    p = jnp.exp(s)
    p = p * (1.0 / jnp.sum(p, axis=-1, keepdims=True))
    if has_dropout:
        p = p * d_ref[0, 0]
    out = jnp.dot(p, v, preferred_element_type=jnp.float32)
    o_ref[...] = out[None, None].astype(o_ref.dtype)


def attention(q, k, v, mask3, attn_drop_mask=None):
    """q, k, v: (B, H, S, d_k); mask3: (B, S, S); attn_drop_mask: (B, H, S, S) or None."""
    B, H, S, dk = q.shape
    has_dropout = attn_drop_mask is not None
    qkv_spec = pl.BlockSpec((1, 1, S, dk), lambda b, h: (b, h, 0, 0))
    in_specs = [qkv_spec, qkv_spec, qkv_spec,
                pl.BlockSpec((1, S, S), lambda b, h: (b, 0, 0))]
    operands = [q, k, v, mask3]
    if has_dropout:
        in_specs.append(pl.BlockSpec((1, 1, S, S), lambda b, h: (b, h, 0, 0)))
        operands.append(attn_drop_mask)
    # TODO(synk): for long sequences replace this SxS-per-head kernel with a flash-attention
    # style online-softmax kernel (kv-tiled grid axis).
    return pl.pallas_call(
        functools.partial(_attention_kernel, scale=1.0 / math.sqrt(dk),
                          has_dropout=has_dropout),
        out_shape=jax.ShapeDtypeStruct((B, H, S, dk), q.dtype),
        grid=(B, H),
        in_specs=in_specs,
        out_specs=qkv_spec,
        compiler_params=_dim_semantics("parallel", "parallel"),
    )(*operands)


# --------------------------------------------------------------------------------------
# EncoderBlock (mirrors the PyTorch module: pre-LN residual attention + feed-forward)
# --------------------------------------------------------------------------------------
class EncoderBlock:
    def __init__(self, d_model, h, d_ff, dropout, key):
        assert d_model % h == 0, "d_model does not divide by h"
        self.d_model, self.h, self.d_ff = d_model, h, d_ff
        self.d_k = d_model // h
        self.dropout = float(dropout)
        self.params = self._init_params(key)

    def _init_params(self, key):
        ks = jax.random.split(key, 12)

        def lin(kw, kb, fan_in, fan_out):
            lim = 1.0 / math.sqrt(fan_in)           # nn.Linear default init range
            w = jax.random.uniform(kw, (fan_in, fan_out), jnp.float32, -lim, lim)
            b = jax.random.uniform(kb, (fan_out,), jnp.float32, -lim, lim)
            return w, b

        p = {}
        p["wq"], p["bq"] = lin(ks[0], ks[1], self.d_model, self.d_model)
        p["wk"], p["bk"] = lin(ks[2], ks[3], self.d_model, self.d_model)
        p["wv"], p["bv"] = lin(ks[4], ks[5], self.d_model, self.d_model)
        p["wo"], p["bo"] = lin(ks[6], ks[7], self.d_model, self.d_model)
        p["w1"], p["b1"] = lin(ks[8], ks[9], self.d_model, self.d_ff)
        p["w2"], p["b2"] = lin(ks[10], ks[11], self.d_ff, self.d_model)
        for i in (1, 2):
            p[f"ln{i}_a"] = jnp.ones((self.d_model,), jnp.float32)
            p[f"ln{i}_b"] = jnp.zeros((self.d_model,), jnp.float32)
        return p

    def _make_dropout_masks(self, key, B, S):
        keep = 1.0 - self.dropout
        R = B * S
        k1, k2, k3, k4 = jax.random.split(key, 4)

        def mask(k, shape):
            return jax.random.bernoulli(k, keep, shape).astype(jnp.float32) / keep

        return (mask(k1, (B, self.h, S, S)),        # attention-prob dropout
                mask(k2, (R, self.d_ff)),           # FFN hidden dropout
                mask(k3, (R, self.d_model)),        # residual-0 dropout
                mask(k4, (R, self.d_model)))        # residual-1 dropout

    def _self_attention(self, x3d, src_mask, attn_drop_mask):
        B, S, D = x3d.shape
        p, h, dk = self.params, self.h, self.d_k
        x2d = x3d.reshape(B * S, D)
        q = linear(x2d, p["wq"], p["bq"]).reshape(B, S, h, dk).transpose(0, 2, 1, 3)
        k = linear(x2d, p["wk"], p["bk"]).reshape(B, S, h, dk).transpose(0, 2, 1, 3)
        v = linear(x2d, p["wv"], p["bv"]).reshape(B, S, h, dk).transpose(0, 2, 1, 3)
        mask3 = jnp.broadcast_to(
            jnp.reshape(src_mask.astype(jnp.float32), (B,) + src_mask.shape[-2:]), (B, S, S))
        o = attention(q, k, v, mask3, attn_drop_mask)            # (B, h, S, d_k)
        o = o.transpose(0, 2, 1, 3).reshape(B * S, D)
        return linear(o, p["wo"], p["bo"])

    def _feed_forward(self, x2d, ffn_drop_mask):
        p = self.params
        hdn = linear(x2d, p["w1"], p["b1"], activation="relu")
        return linear(hdn, p["w2"], p["b2"], in_mask=ffn_drop_mask)

    def __call__(self, x, src_mask, *, training=False, dropout_key=None):
        B, S, D = x.shape
        p = self.params
        use_drop = training and self.dropout > 0.0
        if use_drop:
            assert dropout_key is not None, "training mode needs a dropout_key"
            m_attn, m_ffn, m_res0, m_res1 = self._make_dropout_masks(dropout_key, B, S)
        else:
            m_attn = m_ffn = m_res0 = m_res1 = None

        x2d = x.reshape(B * S, D)
        # residual connection 0: x = x + dropout(self_attention(norm(x), src_mask))
        n0 = layernorm(x2d, p["ln1_a"], p["ln1_b"])
        attn_out = self._self_attention(n0.reshape(B, S, D), src_mask, m_attn)
        x2d = residual_add(x2d, attn_out, m_res0)
        # residual connection 1: x = x + dropout(feed_forward(norm(x)))
        n1 = layernorm(x2d, p["ln2_a"], p["ln2_b"])
        ff_out = self._feed_forward(n1, m_ffn)
        x2d = residual_add(x2d, ff_out, m_res1)
        return x2d.reshape(B, S, D)


# --------------------------------------------------------------------------------------
# pure-JAX reference (eval mode, dropout = identity) for correctness checking
# --------------------------------------------------------------------------------------
def _ref_encoder_block(x, src_mask, p, h):
    def ln(t, a, b):
        mean = t.mean(-1, keepdims=True)
        var = ((t - mean) ** 2).sum(-1, keepdims=True) / (t.shape[-1] - 1)
        return a * (t - mean) / (jnp.sqrt(var) + EPS) + b

    B, S, D = x.shape
    dk = D // h
    n = ln(x, p["ln1_a"], p["ln1_b"])
    q = (n @ p["wq"] + p["bq"]).reshape(B, S, h, dk).transpose(0, 2, 1, 3)
    k = (n @ p["wk"] + p["bk"]).reshape(B, S, h, dk).transpose(0, 2, 1, 3)
    v = (n @ p["wv"] + p["bv"]).reshape(B, S, h, dk).transpose(0, 2, 1, 3)
    s = jnp.einsum("bhqd,bhkd->bhqk", q, k) / math.sqrt(dk)
    s = jnp.where(src_mask == 0, -1e9, s)
    attn = jnp.einsum("bhqk,bhkd->bhqd", jax.nn.softmax(s, axis=-1), v)
    attn = attn.transpose(0, 2, 1, 3).reshape(B, S, D) @ p["wo"] + p["bo"]
    x = x + attn
    n = ln(x, p["ln2_a"], p["ln2_b"])
    ff = jnp.maximum(n @ p["w1"] + p["b1"], 0.0) @ p["w2"] + p["b2"]
    return x + ff


if __name__ == "__main__":
    B, S, D, H, D_FF = 2, 8, 64, 4, 128
    key = jax.random.PRNGKey(0)
    k_param, k_x, k_drop = jax.random.split(key, 3)

    block = EncoderBlock(d_model=D, h=H, d_ff=D_FF, dropout=0.1, key=k_param)
    x = jax.random.normal(k_x, (B, S, D), jnp.float32)
    # padding-style source mask: last two key positions of batch 1 are masked out
    src_mask = jnp.ones((B, 1, 1, S), jnp.float32).at[1, :, :, S - 2:].set(0.0)

    # eval mode (dropout = identity): check against pure-JAX reference
    out_eval = block(x, src_mask, training=False)
    jax.block_until_ready(out_eval)
    ref = _ref_encoder_block(x, src_mask, block.params, H)
    assert out_eval.shape == (B, S, D)
    err = float(jnp.max(jnp.abs(out_eval - ref)))
    assert err < 2e-2, f"mismatch vs reference: {err}"

    # training mode (dropout via precomputed scaled keep-masks): exercise the path
    out_train = block(x, src_mask, training=True, dropout_key=k_drop)
    jax.block_until_ready(out_train)
    assert out_train.shape == (B, S, D)

    print("KERNEL_OK")
</pallas_src>

<mosaic_0001>
module attributes {stable_mosaic.version = 11 : i64} {
  func.func @_layernorm_kernel(%arg0: i32, %arg1: memref<16x64xf32, #tpu.memory_space<vmem>>, %arg2: memref<1x64xf32, #tpu.memory_space<vmem>>, %arg3: memref<1x64xf32, #tpu.memory_space<vmem>>, %arg4: memref<16x64xf32, #tpu.memory_space<vmem>>) attributes {dimension_semantics = [#tpu.dimension_semantics<arbitrary>], iteration_bounds = array<i64: 1>, scalar_prefetch = 0 : i64, scratch_operands = 0 : i64, tpu.core_type = #tpu.core_type<tc>, window_params = [{transform_indices = @transform_0, window_bounds = array<i64: 16, 64>}, {pipeline_mode = #tpu.pipeline_mode<synchronous>, transform_indices = @transform_1, window_bounds = array<i64: 1, 64>}, {pipeline_mode = #tpu.pipeline_mode<synchronous>, transform_indices = @transform_2, window_bounds = array<i64: 1, 64>}, {transform_indices = @transform_3, window_bounds = array<i64: 16, 64>}]} {
    %c0 = arith.constant 0 : index
    %c0_0 = arith.constant 0 : index
    %0 = vector.load %arg1[%c0, %c0_0] : memref<16x64xf32, #tpu.memory_space<vmem>>, vector<16x64xf32>
    %cst = arith.constant dense<0.000000e+00> : vector<16xf32>
    %1 = vector.multi_reduction <add>, %0, %cst [1] : vector<16x64xf32> to vector<16xf32>
    %2 = vector.shape_cast %1 : vector<16xf32> to vector<16x1xf32>
    %cst_1 = arith.constant 6.400000e+01 : f32
    %3 = vector.broadcast %cst_1 : f32 to vector<16x1xf32>
    %4 = arith.divf %2, %3 : vector<16x1xf32>
    %5 = vector.broadcast %4 : vector<16x1xf32> to vector<16x64xf32>
    %6 = arith.subf %0, %5 : vector<16x64xf32>
    %7 = arith.mulf %6, %6 : vector<16x64xf32>
    %cst_2 = arith.constant dense<0.000000e+00> : vector<16xf32>
    %8 = vector.multi_reduction <add>, %7, %cst_2 [1] : vector<16x64xf32> to vector<16xf32>
    %9 = vector.shape_cast %8 : vector<16xf32> to vector<16x1xf32>
    %cst_3 = arith.constant 0.0158730168 : f32
    %10 = vector.broadcast %cst_3 : f32 to vector<16x1xf32>
    %11 = arith.mulf %9, %10 : vector<16x1xf32>
    %12 = math.sqrt %11 : vector<16x1xf32>
    %cst_4 = arith.constant 9.99999974E-6 : f32
    %13 = vector.broadcast %cst_4 : f32 to vector<16x1xf32>
    %14 = arith.addf %12, %13 : vector<16x1xf32>
    %cst_5 = arith.constant 1.000000e+00 : f32
    %15 = vector.broadcast %cst_5 : f32 to vector<16x1xf32>
    %16 = arith.divf %15, %14 : vector<16x1xf32>
    %c0_6 = arith.constant 0 : index
    %c0_7 = arith.constant 0 : index
    %17 = vector.load %arg2[%c0_6, %c0_7] : memref<1x64xf32, #tpu.memory_space<vmem>>, vector<1x64xf32>
    %18 = vector.broadcast %17 : vector<1x64xf32> to vector<16x64xf32>
    %19 = arith.mulf %18, %6 : vector<16x64xf32>
    %20 = vector.broadcast %16 : vector<16x1xf32> to vector<16x64xf32>
    %21 = arith.mulf %19, %20 : vector<16x64xf32>
    %c0_8 = arith.constant 0 : index
    %c0_9 = arith.constant 0 : index
    %22 = vector.load %arg3[%c0_8, %c0_9] : memref<1x64xf32, #tpu.memory_space<vmem>>, vector<1x64xf32>
    %23 = vector.broadcast %22 : vector<1x64xf32> to vector<16x64xf32>
    %24 = arith.addf %21, %23 : vector<16x64xf32>
    %c0_10 = arith.constant 0 : index
    %c0_11 = arith.constant 0 : index
    %25 = vector.load %arg4[%c0_10, %c0_11] : memref<16x64xf32, #tpu.memory_space<vmem>>, vector<16x64xf32>
    tpu.vector_store %arg4[%c0_10, %c0_11], %24 {strides = array<i32>} : memref<16x64xf32, #tpu.memory_space<vmem>>, vector<16x64xf32>,
    return
  }
  func.func @transform_0(%arg0: i32) -> (i32, i32) {
    %c0_i32 = arith.constant 0 : i32
    %c0_i32_0 = arith.constant 0 : i32
    return %arg0, %c0_i32 : i32, i32
  }
  func.func @transform_1(%arg0: i32) -> (i32, i32) {
    %c0_i32 = arith.constant 0 : i32
    %c0_i32_0 = arith.constant 0 : i32
    %c0_i32_1 = arith.constant 0 : i32
    return %c0_i32, %c0_i32_0 : i32, i32
  }
  func.func @transform_2(%arg0: i32) -> (i32, i32) {
    %c0_i32 = arith.constant 0 : i32
    %c0_i32_0 = arith.constant 0 : i32
    %c0_i32_1 = arith.constant 0 : i32
    return %c0_i32, %c0_i32_0 : i32, i32
  }
  func.func @transform_3(%arg0: i32) -> (i32, i32) {
    %c0_i32 = arith.constant 0 : i32
    %c0_i32_0 = arith.constant 0 : i32
    return %arg0, %c0_i32 : i32, i32
  }
}

</mosaic_0001>

<llo_original>
// kernel: tpu_custom_call.1
$region0: #{tpu_custom_call.1}
  #allocation0 [shape = 'u32[]', space=smem, size = 0x4, offset = 0x4, fixed_abs, tag = 'smem constant byte address 0x4 - core index']
  #allocation1 [shape = 'u32[144,128]{1,0:T(1,128)}', space=vmem, size = 0x12000, scoped, tag = 'internal scratch']
  %s0 = inlined_call_operand.hbm [shape: f32[16,64], index: 0, kind: input, shape index: {}]
  %s1 = inlined_call_operand.vmem [shape: f32[1,64], index: 1, kind: input, shape index: {}]
  %s2 = inlined_call_operand.vmem [shape: f32[1,64], index: 2, kind: input, shape index: {}]
  %s3 = inlined_call_operand.hbm [shape: f32[16,64], index: 3, kind: output, shape index: {}]
  %s4 = sld [smem:[#allocation0]]
  $region26: #{tpu_custom_call.1} parent=0
    _
  %s6 = ssub.s32 1, %s4
  %s7 = scalar_select 0, %s6, %s4
  $region1: #{tpu_custom_call.1} parent=0
    #allocation2 [shape = 'u8[8192]{0}', space=vmem, size = 0x2000, scoped, tag = 'input window, operand 0, single buffered']
    #allocation3 [shape = 's32[1]{0}', space=sflag, size = 0x4, scoped, tag = 'scoped memory for tpu_custom_call.1']
    #allocation4 [shape = 's32[1]{0}', space=sflag, size = 0x4, scoped, tag = 'scoped memory for tpu_custom_call.1']
    #allocation5 [shape = 'u8[8192]{0}', space=vmem, size = 0x2000, scoped, tag = 'output window, operand 0, single buffered']
    %8 = vsyncpa [#allocation3], 0
    %9 = vsyncpa [#allocation4], 0
    // Predicated region
    $region2: #{tpu_custom_call.1} parent=1 // pred_check
      _
    $region3: #{tpu_custom_call.1} parent=1 // pred_check_branch
      %11 = sbr.rel (0) target = $region5
    $region4: #{tpu_custom_call.1} parent=1 // pred_region
      %s13 = ssub.s32 256, 256
      %14 = vsyncadd [#allocation3], %s13
      %s15 = sshll.u32 [#allocation2], 4
      %s16 = int_to_ptr.vmem [resolvable:$true] %s15
      %21 = dma.hbm_to_vmem [thread:$0]  %s0, 256, %s16, [#allocation3], 128, 128, 8
    $region5: #{tpu_custom_call.1} parent=1 // pred_fallthru
      _
    // Predicated region
    $region6: #{tpu_custom_call.1} parent=1 // pred_check
      _
    $region7: #{tpu_custom_call.1} parent=1 // pred_check_branch
      %23 = sbr.rel (0) target = $region9
    $region8: #{tpu_custom_call.1} parent=1 // pred_region
      _
    $region9: #{tpu_custom_call.1} parent=1 // pred_fallthru
      _
    // Predicated region
    $region10: #{tpu_custom_call.1} parent=1 // pred_check
      _
    $region11: #{tpu_custom_call.1} parent=1 // pred_check_branch
      %25 = sbr.rel (0) target = $region13
    $region12: #{tpu_custom_call.1} parent=1 // pred_region
      _
    $region13: #{tpu_custom_call.1} parent=1 // pred_fallthru
      _
    // Predicated region
    $region14: #{tpu_custom_call.1} parent=1 // pred_check
      _
    $region15: #{tpu_custom_call.1} parent=1 // pred_check_branch
      %27 = sbr.rel (0) target = $region17
    $region16: #{tpu_custom_call.1} parent=1 // pred_region
      %28 = dma.done [#allocation3], 256
    $region17: #{tpu_custom_call.1} parent=1 // pred_fallthru
      _
    %v29 = vld [vmem:[#allocation2] sm:$0xff]
    %v30 = vld [vmem:[#allocation2 + $0x8] sm:$0xff]
    %vm31 = vcmask 523264
    %v32 = vsel %vm31, %v29, 0.0
    %33 = vadd.xlane.f32.xlu0 %v32
    %v34 = vpop.xlane.xlu0 %33
    %v35 = vsel %vm31, %v30, 0.0
    %36 = vadd.xlane.f32.xlu0 %v35
    %v37 = vpop.xlane.xlu0 %36
    %v38 = vrcp.pop 64.0
    %v39 = vmul.f32 %v34, %v38
    %v40 = vmul.f32 %v37, %v38
    %v41 = vsub.f32 %v29, %v39
    %v42 = vsub.f32 %v30, %v40
    %v43 = vmul.f32 %v41, %v41
    %v44 = vmul.f32 %v42, %v42
    %v45 = vsel %vm31, %v43, 0.0
    %46 = vadd.xlane.f32.xlu0 %v45
    %v47 = vpop.xlane.xlu0 %46
    %v48 = vsel %vm31, %v44, 0.0
    %49 = vadd.xlane.f32.xlu0 %v48
    %v50 = vpop.xlane.xlu0 %49
    %v51 = vmul.f32 %v47, 0.015873017
    %v52 = vmul.f32 %v50, 0.015873017
    %v53 = vrsqrt.pop %v51
    %v54 = vmul.f32 %v51, %v53
    %vm55 = vcmp.eq.f32.partialorder %v51, inf
    %v56 = vsel %vm55, %v51, %v54
    %vm57 = vcmp.eq.f32.partialorder %v51, 0.0
    %v58 = vand.u32 %v51, 2147483648
    %v59 = vsel %vm57, %v58, %v56
    %v60 = vrsqrt.pop %v52
    %v61 = vmul.f32 %v52, %v60
    %vm62 = vcmp.eq.f32.partialorder %v52, inf
    %v63 = vsel %vm62, %v52, %v61
    %vm64 = vcmp.eq.f32.partialorder %v52, 0.0
    %v65 = vand.u32 %v52, 2147483648
    %v66 = vsel %vm64, %v65, %v63
    %v67 = vadd.f32 %v59, 1e-05
    %v68 = vadd.f32 %v66, 1e-05
    %v69 = vrcp.pop %v67
    %v70 = vmul.f32 1.0, %v69
    %v71 = vrcp.pop %v68
    %v72 = vmul.f32 1.0, %v71
    %v73 = vld [vmem:[%s1] sm:$0x1]
    %v75 = vlaneseq
    %v76 = vshrl.u32 %v75, 7
    %v77 = vsub.s32 0, %v76
    %v78 = vrot.slane %v73, %v77
    %v80 = vmul.f32 %v78, %v41
    %v81 = vmul.f32 %v78, %v42
    %v82 = vmul.f32 %v80, %v70
    %v83 = vmul.f32 %v81, %v72
    %v84 = vld [vmem:[%s2] sm:$0x1]
    %v86 = vlaneseq
    %v87 = vshrl.u32 %v86, 7
    %v88 = vsub.s32 0, %v87
    %v89 = vrot.slane %v84, %v88
    %v91 = vadd.f32 %v82, %v89
    %v92 = vadd.f32 %v83, %v89
    %93 = vst.msk [vmem:[#allocation5] sm:$0xff] %vm31, %v91
    %94 = vst.msk [vmem:[#allocation5 + $0x8] sm:$0xff] %vm31, %v92
    // Predicated region
    $region18: #{tpu_custom_call.1} parent=1 // pred_check
      _
    $region19: #{tpu_custom_call.1} parent=1 // pred_check_branch
      %96 = sbr.rel (0) target = $region21
    $region20: #{tpu_custom_call.1} parent=1 // pred_region
      %s98 = ssub.s32 256, 256
      %99 = vsyncadd [#allocation4], %s98
      %s100 = sshll.u32 [#allocation5], 4
      %s101 = int_to_ptr.vmem [resolvable:$true] %s100
      %106 = dma.vmem_to_hbm [thread:$0]  %s101, 256, %s3, [#allocation4], 128, 128, 8
    $region21: #{tpu_custom_call.1} parent=1 // pred_fallthru
      _
    // Predicated region
    $region22: #{tpu_custom_call.1} parent=1 // pred_check
      _
    $region23: #{tpu_custom_call.1} parent=1 // pred_check_branch
      %108 = sbr.rel (0) target = $region25
    $region24: #{tpu_custom_call.1} parent=1 // pred_region
      %109 = dma.done [#allocation4], 256
    $region25: #{tpu_custom_call.1} parent=1 // pred_fallthru
      _
    %110 = vsyncpa [#allocation3], 1
    %111 = vsyncpa [#allocation4], 1

</llo_original>
